<compile_context>
chip_gen: v5e
topology: v5e:2x2
jax: 0.10.0
libtpu: 0.0.40
codegen_flags: <defaults>
</compile_context>

<pallas_src>
import functools

import jax
import jax.numpy as jnp
import numpy as np
from jax.experimental import pallas as pl
from jax.experimental.pallas import tpu as pltpu

C = 3   # torch.split(v1, [1, 1, 1], dim=1) => channel dim must be 3
W = 3   # torch.split(v1, [1, 1, 1], dim=3) => width dim must be 3

_VMEM_BUDGET_BYTES = 8 * 1024 * 1024   # in+out, double-buffered; < scoped default on v5e/v6e/v7x
_MAX_TN = 8192


def _round_up(x, m):
    return (x + m - 1) // m * m


def _pick_tn(n, h, itemsize):
    """Batch rows per grid step: VMEM-aware, multiple of 8, >=2 blocks when possible."""
    lane_bytes = _round_up(C * W * h, 128) * itemsize            # padded VMEM row bytes
    tn = _VMEM_BUDGET_BYTES // (4 * lane_bytes)                  # 2 operands x 2 buffers
    tn = max(8, min(_MAX_TN, (tn // 8) * 8))
    if n <= 8:
        return n                                                 # full-extent block (always legal)
    # Keep at least 2 grid steps so the "parallel" axis can engage both v7x TensorCores.
    tn = min(tn, _round_up(pl.cdiv(n, 2), 8))
    return max(8, tn)


# ----------------------------- kernels ------------------------------------

def _permute_kernel(x_ref, o_ref, *, h):
    # Single-pass path: full (c,h,w)->(w,c,h) lane permutation in registers.
    # x_ref: (tn, 9h), lane index = (c*h + hh)*W + w   (v1.reshape(N, 9h))
    # o_ref: (tn, 9h), lane index = (w*C + c)*h + hh   (cat(split(dim=3), dim=1))
    x = x_ref[...]
    tn = x.shape[0]
    x = x.reshape(tn, C * h, W)          # split lanes: (tn, c*h+hh, w)
    x = jnp.swapaxes(x, 1, 2)            # minor-dims transpose: (tn, w, c*h+hh)
    o_ref[...] = x.reshape(tn, W * C * h)  # one lane-dense full-width store


def _regroup_kernel(x_ref, o_ref, *, h):
    # Fallback second pass: input already minor-transposed by XLA, so only a
    # static block permutation of nine contiguous h-wide lane chunks remains.
    # x_ref: (tn, 9h), lane index = (c*W + w)*h + hh
    x = x_ref[...]
    chunks = [x[:, (c * W + w) * h:(c * W + w) * h + h]
              for w in range(W) for c in range(C)]
    o_ref[...] = jnp.concatenate(chunks, axis=1)   # single lane-dense store


def _run_rowwise(kernel, x2d, h):
    n, lanes = x2d.shape
    tn = _pick_tn(n, h, jnp.dtype(x2d.dtype).itemsize)
    return pl.pallas_call(
        kernel,
        out_shape=jax.ShapeDtypeStruct((n, lanes), x2d.dtype),
        grid=(pl.cdiv(n, tn),),                       # ragged last block handled by Pallas
        in_specs=[pl.BlockSpec((tn, lanes), lambda i: (i, 0))],
        out_specs=pl.BlockSpec((tn, lanes), lambda i: (i, 0)),
        compiler_params=pltpu.CompilerParams(dimension_semantics=("parallel",)),
    )(x2d)


# --------------------------- concat variants -------------------------------

def _concat_single_pass(v1):
    n, _, h, _ = v1.shape
    x2d = v1.reshape(n, C * h * W)                                # free reshape
    out2d = _run_rowwise(functools.partial(_permute_kernel, h=h), x2d, h)
    return out2d.reshape(n, W * C, h, 1)                          # free reshape


def _concat_two_pass(v1):
    n, _, h, _ = v1.shape
    x2d = jnp.transpose(v1, (0, 1, 3, 2)).reshape(n, C * W * h)   # one XLA minor transpose
    out2d = _run_rowwise(functools.partial(_regroup_kernel, h=h), x2d, h)
    return out2d.reshape(n, W * C, h, 1)


_SINGLE_PASS_OK = {}


def _single_pass_supported(h, dtype):
    """Probe (once per (H, dtype)) that the single-pass in-kernel relayout lowers
    and is bit-exact on this backend; otherwise use the two-pass fallback."""
    key = (int(h), jnp.dtype(dtype).name)
    if key not in _SINGLE_PASS_OK:
        ok = False
        try:
            with jax.ensure_compile_time_eval():
                n = 16
                x = (jnp.arange(n * C * h * W, dtype=jnp.float32)
                     .reshape(n, C, h, W).astype(dtype))
                got = _concat_single_pass(x)
                want = jnp.transpose(x, (0, 3, 1, 2)).reshape(n, W * C, h, 1)
                ok = bool(jnp.array_equal(got, want))
        except Exception:
            ok = False
        _SINGLE_PASS_OK[key] = ok
    return _SINGLE_PASS_OK[key]


# ------------------------------ forward ------------------------------------

def model1_forward(v1):
    """v1: (N, 3, H, 3). Returns (concatenated, (s0, s1, s2)) like Model1.forward."""
    n, c, h, w = v1.shape
    assert c == C and w == W, "Model1.forward requires channel dim == 3 and width dim == 3"

    if _single_pass_supported(h, v1.dtype):
        concatenated = _concat_single_pass(v1)
    else:
        # TODO(synk): drop this path once the in-kernel lane-splitting reshape is
        # confirmed supported on all target TPU generations.
        concatenated = _concat_two_pass(v1)

    # torch.split(v1, [1, 1, 1], dim=1): three plain slices, no kernel needed.
    splits = tuple(v1[:, i:i + 1, :, :] for i in range(C))
    return concatenated, splits


# ------------------------------ testing ------------------------------------

def _reference_forward(v1):
    cat = jnp.concatenate([v1[:, :, :, i:i + 1] for i in range(W)], axis=1)
    return cat, tuple(v1[:, i:i + 1, :, :] for i in range(C))


def _check(v1, fwd):
    cat, splits = fwd(v1)
    jax.block_until_ready(cat)
    ref_cat, ref_splits = _reference_forward(v1)
    np.testing.assert_array_equal(np.asarray(cat), np.asarray(ref_cat))
    for got, want in zip(splits, ref_splits):
        np.testing.assert_array_equal(np.asarray(got), np.asarray(want))
    n, _, h, _ = v1.shape
    assert cat.shape == (n, W * C, h, 1)
    assert all(s.shape == (n, 1, h, W) for s in splits)


if __name__ == "__main__":
    key = jax.random.PRNGKey(0)
    # Model1.__init__ builds Conv2d(3, 32, 3) layers that forward() never uses,
    # so no parameters are needed for the forward pass.
    k0, k1, k2 = jax.random.split(key, 3)

    # Primary small example consistent with forward(): dims 1 and 3 must be 3.
    v1 = jax.random.normal(k0, (2, C, 16, W), dtype=jnp.float32)
    _check(v1, model1_forward)                    # eager (also runs the feature probe)

    fwd = jax.jit(model1_forward)
    _check(v1, fwd)                                                             # jitted, tiny batch
    _check(jax.random.normal(k1, (4096, C, 16, W), dtype=jnp.float32), fwd)     # 2-step grid
    _check(jax.random.normal(k2, (2500, C, 8, W), dtype=jnp.float32), fwd)      # ragged last block

    print("KERNEL_OK")
</pallas_src>

<mosaic_0001>
module attributes {stable_mosaic.version = 11 : i64} {
  func.func @_permute_kernel(%arg0: i32, %arg1: memref<8x144xf32, #tpu.memory_space<vmem>>, %arg2: memref<8x144xf32, #tpu.memory_space<vmem>>) attributes {dimension_semantics = [#tpu.dimension_semantics<parallel>], iteration_bounds = array<i64: 2>, scalar_prefetch = 0 : i64, scratch_operands = 0 : i64, tpu.core_type = #tpu.core_type<tc>, window_params = [{transform_indices = @transform_0, window_bounds = array<i64: 8, 144>}, {transform_indices = @transform_1, window_bounds = array<i64: 8, 144>}]} {
    %c0 = arith.constant 0 : index
    %c0_0 = arith.constant 0 : index
    %0 = vector.load %arg1[%c0, %c0_0] : memref<8x144xf32, #tpu.memory_space<vmem>>, vector<8x144xf32>
    %1 = vector.shape_cast %0 : vector<8x144xf32> to vector<8x48x3xf32>
    %2 = tpu.transpose %1, [0, 2, 1] : vector<8x48x3xf32> -> vector<8x3x48xf32>
    %3 = vector.shape_cast %2 : vector<8x3x48xf32> to vector<8x144xf32>
    %c0_1 = arith.constant 0 : index
    %c0_2 = arith.constant 0 : index
    %4 = vector.load %arg2[%c0_1, %c0_2] : memref<8x144xf32, #tpu.memory_space<vmem>>, vector<8x144xf32>
    tpu.vector_store %arg2[%c0_1, %c0_2], %3 {strides = array<i32>} : memref<8x144xf32, #tpu.memory_space<vmem>>, vector<8x144xf32>,
    return
  }
  func.func @transform_0(%arg0: i32) -> (i32, i32) {
    %c0_i32 = arith.constant 0 : i32
    %c0_i32_0 = arith.constant 0 : i32
    return %arg0, %c0_i32 : i32, i32
  }
  func.func @transform_1(%arg0: i32) -> (i32, i32) {
    %c0_i32 = arith.constant 0 : i32
    %c0_i32_0 = arith.constant 0 : i32
    return %arg0, %c0_i32 : i32, i32
  }
}

module attributes {stable_mosaic.version = 11 : i64} {
  func.func @_regroup_kernel(%arg0: i32, %arg1: memref<2x144xf32, #tpu.memory_space<vmem>>, %arg2: memref<2x144xf32, #tpu.memory_space<vmem>>) attributes {dimension_semantics = [#tpu.dimension_semantics<parallel>], iteration_bounds = array<i64: 1>, scalar_prefetch = 0 : i64, scratch_operands = 0 : i64, tpu.core_type = #tpu.core_type<tc>, window_params = [{transform_indices = @transform_0, window_bounds = array<i64: 2, 144>}, {transform_indices = @transform_1, window_bounds = array<i64: 2, 144>}]} {
    %c0 = arith.constant 0 : index
    %c0_0 = arith.constant 0 : index
    %0 = vector.load %arg1[%c0, %c0_0] : memref<2x144xf32, #tpu.memory_space<vmem>>, vector<2x144xf32>
    %1 = vector.extract_strided_slice %0 {offsets = [0, 0], sizes = [2, 16], strides = [1, 1]} : vector<2x144xf32> to vector<2x16xf32>
    %2 = vector.extract_strided_slice %0 {offsets = [0, 48], sizes = [2, 16], strides = [1, 1]} : vector<2x144xf32> to vector<2x16xf32>
    %3 = vector.extract_strided_slice %0 {offsets = [0, 96], sizes = [2, 16], strides = [1, 1]} : vector<2x144xf32> to vector<2x16xf32>
    %4 = vector.extract_strided_slice %0 {offsets = [0, 16], sizes = [2, 16], strides = [1, 1]} : vector<2x144xf32> to vector<2x16xf32>
    %5 = vector.extract_strided_slice %0 {offsets = [0, 64], sizes = [2, 16], strides = [1, 1]} : vector<2x144xf32> to vector<2x16xf32>
    %6 = vector.extract_strided_slice %0 {offsets = [0, 112], sizes = [2, 16], strides = [1, 1]} : vector<2x144xf32> to vector<2x16xf32>
    %7 = vector.extract_strided_slice %0 {offsets = [0, 32], sizes = [2, 16], strides = [1, 1]} : vector<2x144xf32> to vector<2x16xf32>
    %8 = vector.extract_strided_slice %0 {offsets = [0, 80], sizes = [2, 16], strides = [1, 1]} : vector<2x144xf32> to vector<2x16xf32>
    %9 = vector.extract_strided_slice %0 {offsets = [0, 128], sizes = [2, 16], strides = [1, 1]} : vector<2x144xf32> to vector<2x16xf32>
    %10 = tpu.concatenate %1, %2, %3, %4, %5, %6, %7, %8, %9 in 1 : vector<2x16xf32>, vector<2x16xf32>, vector<2x16xf32>, vector<2x16xf32>, vector<2x16xf32>, vector<2x16xf32>, vector<2x16xf32>, vector<2x16xf32>, vector<2x16xf32> -> vector<2x144xf32>
    %c0_1 = arith.constant 0 : index
    %c0_2 = arith.constant 0 : index
    %11 = vector.load %arg2[%c0_1, %c0_2] : memref<2x144xf32, #tpu.memory_space<vmem>>, vector<2x144xf32>
    tpu.vector_store %arg2[%c0_1, %c0_2], %10 {strides = array<i32>} : memref<2x144xf32, #tpu.memory_space<vmem>>, vector<2x144xf32>,
    return
  }
  func.func @transform_0(%arg0: i32) -> (i32, i32) {
    %c0_i32 = arith.constant 0 : i32
    %c0_i32_0 = arith.constant 0 : i32
    return %arg0, %c0_i32 : i32, i32
  }
  func.func @transform_1(%arg0: i32) -> (i32, i32) {
    %c0_i32 = arith.constant 0 : i32
    %c0_i32_0 = arith.constant 0 : i32
    return %arg0, %c0_i32 : i32, i32
  }
}

</mosaic_0001>

<llo_original>
// kernel: tpu_custom_call.1
$region0: #{tpu_custom_call.1}
  #allocation0 [shape = 'u32[]', space=smem, size = 0x4, offset = 0x4, fixed_abs, tag = 'smem constant byte address 0x4 - core index']
  #allocation1 [shape = 'u32[72,128]{1,0:T(1,128)}', space=vmem, size = 0x9000, scoped, tag = 'internal scratch']
  %s0 = inlined_call_operand.hbm [shape: f32[16,144], index: 0, kind: input, shape index: {}]
  %s1 = inlined_call_operand.hbm [shape: f32[16,144], index: 1, kind: output, shape index: {}]
  %s2 = sld [smem:[#allocation0]]
  $region41: #{tpu_custom_call.1} parent=0
    _
  %s4 = ssub.s32 1, %s2
  %s5 = scalar_select 0, %s4, %s2
  $region1: #{tpu_custom_call.1} parent=0
    #allocation2 [shape = 'u8[16384]{0}', space=vmem, size = 0x4000, scoped, tag = 'input window, operand 0']
    #allocation3 [shape = 's32[2]{0}', space=sflag, size = 0x8, scoped, tag = 'scoped memory for tpu_custom_call.1']
    #allocation4 [shape = 's32[2]{0}', space=sflag, size = 0x8, scoped, tag = 'scoped memory for tpu_custom_call.1']
    #allocation5 [shape = 'u8[16384]{0}', space=vmem, size = 0x4000, scoped, tag = 'output window, operand 0']
    %6 = vsyncpa [#allocation3], 0
    %s7 = scalar_lea.sflag [#allocation3], 1
    %8 = vsyncpa %s7, 0
    %9 = vsyncpa [#allocation4], 0
    %s10 = scalar_lea.sflag [#allocation4], 1
    %11 = vsyncpa %s10, 0
    loop: start=0, step=1, limit=4
    $region2: #{tpu_custom_call.1} parent=1 // loop_pre_header
      _
    $region3: #{tpu_custom_call.1} parent=1 // loop_header
      %s13 = sphi 0, %s17
      %p14 = scmp.ge.s32.totalorder %s13, 4
      %s23 = sphi 0, %s25
      %s26 = sphi 0, %s23
      %s27 = sphi 0, %s26
      %s43 = sphi 0, %s27
      %s49 = sphi 0, %s51
      %s52 = sphi 0, %s49
      %s53 = sphi 0, %s52
      %s69 = sphi 0, %s53
    $region4: #{tpu_custom_call.1} parent=1 // loop_header_branch
      %16 = sbr.rel (%p14) target = $region8
    $region5: #{tpu_custom_call.1} parent=1 // loop_body
      %s18 = ssub.s32 %s13, 1
      %s19 = ssub.s32 %s13, 2
      %s20 = sadd.s32 %s13, 1
      %s21 = ssub.s32 %s13, %s20
      %p22 = scmp.eq.s32.totalorder %s21, 0
      %s24 = sadd.s32 %s23, 1
      %s25 = scalar_select %p22, %s23, %s24
      %p28 = pneg %p22
      %p29 = scmp.eq.s32.totalorder %s13, 1
      %p30 = por %p28, %p29
      %p31 = scmp.ne.s32.totalorder %s23, %s26
      %p32 = scmp.eq.s32.totalorder %s13, 0
      %p33 = por %p31, %p32
      %p34 = scmp.ne.s32.totalorder %s23, %s26
      %p35 = scmp.eq.s32.totalorder %s18, 1
      %p36 = por %p34, %p35
      %p37 = scmp.ne.s32.totalorder %s26, %s27
      %p38 = scmp.eq.s32.totalorder %s18, 0
      %p39 = por %p37, %p38
      %p40 = scmp.ne.s32.totalorder %s26, %s27
      %p41 = scmp.eq.s32.totalorder %s19, 1
      %p42 = por %p40, %p41
      %p44 = scmp.ne.s32.totalorder %s27, %s43
      %p45 = scmp.eq.s32.totalorder %s19, 0
      %p46 = por %p44, %p45
      %s47 = ssub.s32 %s13, %s20
      %p48 = scmp.eq.s32.totalorder %s47, 0
      %s50 = sadd.s32 %s49, 1
      %s51 = scalar_select %p48, %s49, %s50
      %p54 = pneg %p48
      %p55 = scmp.eq.s32.totalorder %s13, 1
      %p56 = por %p54, %p55
      %p57 = scmp.ne.s32.totalorder %s49, %s52
      %p58 = scmp.eq.s32.totalorder %s13, 0
      %p59 = por %p57, %p58
      %p60 = scmp.ne.s32.totalorder %s49, %s52
      %p61 = scmp.eq.s32.totalorder %s18, 1
      %p62 = por %p60, %p61
      %p63 = scmp.ne.s32.totalorder %s52, %s53
      %p64 = scmp.eq.s32.totalorder %s18, 0
      %p65 = por %p63, %p64
      %p66 = scmp.ne.s32.totalorder %s52, %s53
      %p67 = scmp.eq.s32.totalorder %s19, 1
      %p68 = por %p66, %p67
      %p70 = scmp.ne.s32.totalorder %s53, %s69
      %p71 = scmp.eq.s32.totalorder %s19, 0
      %p72 = por %p70, %p71
      %p73 = scmp.le.s32.totalorder 1, %s13
      %p74 = scmp.lt.s32.totalorder %s13, 3
      %p75 = pnand %p73, %p74
      %p76 = pneg %p75
      // Predicated region
      $region9: #{tpu_custom_call.1} parent=5 // pred_check
        _
      $region10: #{tpu_custom_call.1} parent=5 // pred_check_branch
        %78 = sbr.rel (%p75) target = $region12
      $region11: #{tpu_custom_call.1} parent=5 // pred_region
        %s79 = ssub.s32 %s13, 1
      $region12: #{tpu_custom_call.1} parent=5 // pred_fallthru
        _
      %p80 = scmp.lt.s32.totalorder %s13, 2
      // Predicated region
      $region13: #{tpu_custom_call.1} parent=5 // pred_check
        %p81 = pneg %p80
      $region14: #{tpu_custom_call.1} parent=5 // pred_check_branch
        %83 = sbr.rel (%p81) target = $region16
      $region15: #{tpu_custom_call.1} parent=5 // pred_region
        // Predicated region
        $region17: #{tpu_custom_call.1} parent=15 // pred_check
          %p84 = pneg %p33
        $region18: #{tpu_custom_call.1} parent=15 // pred_check_branch
          %86 = sbr.rel (%p84) target = $region20
        $region19: #{tpu_custom_call.1} parent=15 // pred_region
          %s87 = sand.u32 %s23, 1
          %s88 = scalar_lea.sflag [#allocation3], %s87
          %s89 = sand.u32 %s23, 1
          %s90 = smul.addr %s89, 16
          %s91 = scalar_lea.vmem [#allocation2], %s90
          %93 = vsyncadd %s88, 0
          %s94 = smul.addr %s13, 2
          %s95 = smul.addr %s94, 8
          %s96 = scalar_lea.hbm %s0, %s95
          %s98 = sshll.u32 %s96, 4
          %s99 = int_to_ptr.hbm [resolvable:$true] %s98
          %s100 = sshll.u32 %s91, 4
          %s101 = int_to_ptr.vmem [resolvable:$true] %s100
          %103 = dma.hbm_to_vmem [thread:$0]  %s99, 256, %s101, %s88
        $region20: #{tpu_custom_call.1} parent=15 // pred_fallthru
          _
      $region16: #{tpu_custom_call.1} parent=5 // pred_fallthru
        _
      %p104 = scmp.le.s32.totalorder 1, %s13
      %p105 = scmp.lt.s32.totalorder %s13, 3
      %p106 = pnand %p104, %p105
      %p107 = pneg %p106
      // Predicated region
      $region21: #{tpu_custom_call.1} parent=5 // pred_check
        _
      $region22: #{tpu_custom_call.1} parent=5 // pred_check_branch
        %109 = sbr.rel (%p106) target = $region24
      $region23: #{tpu_custom_call.1} parent=5 // pred_region
        %s110 = ssub.s32 %s13, 1
        %s111 = sand.u32 %s26, 1
        %s112 = scalar_lea.sflag [#allocation3], %s111
        %s113 = sand.u32 %s26, 1
        %s114 = smul.addr %s113, 16
        %s115 = scalar_lea.vmem [#allocation2], %s114
        // Predicated region
        $region25: #{tpu_custom_call.1} parent=23 // pred_check
          %p116 = pneg %p39
        $region26: #{tpu_custom_call.1} parent=23 // pred_check_branch
          %118 = sbr.rel (%p116) target = $region28
        $region27: #{tpu_custom_call.1} parent=23 // pred_region
          %120 = dma.done %s112, 256
        $region28: #{tpu_custom_call.1} parent=23 // pred_fallthru
          _
        %s121 = sand.u32 %s26, 1
        %s122 = scalar_lea.sflag [#allocation3], %s121
        %s123 = sand.u32 %s26, 1
        %s124 = smul.addr %s123, 16
        %s125 = scalar_lea.vmem [#allocation2], %s124
        %p126 = pneg %p39
        %p127 = pneg %p36
        %p128 = pneg %p65
        %p129 = pneg %p62
        %s130 = sand.u32 %s52, 1
        %s131 = scalar_lea.sflag [#allocation4], %s130
        %s132 = sand.u32 %s52, 1
        %s133 = smul.addr %s132, 16
        %s134 = scalar_lea.vmem [#allocation5], %s133
        %v135 = vld [vmem:[%s115] sm:$0xff]
        %v136 = vld [vmem:[%s115 + $0x8] sm:$0xff]
        %138 = vrot.lane.b32.xlu0 %v135, 125
        %v139 = vpop.permute.xlu0 %138
        %141 = vrot.lane.b32.xlu0 %v135, 122
        %v142 = vpop.permute.xlu0 %141
        %144 = vrot.lane.b32.xlu0 %v135, 119
        %v145 = vpop.permute.xlu0 %144
        %147 = vrot.lane.b32.xlu0 %v135, 116
        %v148 = vpop.permute.xlu0 %147
        %150 = vrot.lane.b32.xlu0 %v135, 113
        %v151 = vpop.permute.xlu0 %150
        %153 = vrot.lane.b32.xlu0 %v135, 110
        %v154 = vpop.permute.xlu0 %153
        %156 = vrot.lane.b32.xlu0 %v135, 107
        %v157 = vpop.permute.xlu0 %156
        %159 = vrot.lane.b32.xlu0 %v135, 104
        %v160 = vpop.permute.xlu0 %159
        %162 = vrot.lane.b32.xlu0 %v135, 101
        %v163 = vpop.permute.xlu0 %162
        %165 = vrot.lane.b32.xlu0 %v135, 98
        %v166 = vpop.permute.xlu0 %165
        %168 = vrot.lane.b32.xlu0 %v135, 95
        %v169 = vpop.permute.xlu0 %168
        %171 = vrot.lane.b32.xlu0 %v135, 92
        %v172 = vpop.permute.xlu0 %171
        %174 = vrot.lane.b32.xlu0 %v135, 89
        %v175 = vpop.permute.xlu0 %174
        %177 = vrot.lane.b32.xlu0 %v135, 86
        %v178 = vpop.permute.xlu0 %177
        %180 = vrot.lane.b32.xlu0 %v135, 83
        %v181 = vpop.permute.xlu0 %180
        %183 = vrot.lane.b32.xlu0 %v135, 80
        %v184 = vpop.permute.xlu0 %183
        %186 = vrot.lane.b32.xlu0 %v135, 77
        %v187 = vpop.permute.xlu0 %186
        %189 = vrot.lane.b32.xlu0 %v135, 74
        %v190 = vpop.permute.xlu0 %189
        %192 = vrot.lane.b32.xlu0 %v135, 71
        %v193 = vpop.permute.xlu0 %192
        %195 = vrot.lane.b32.xlu0 %v135, 68
        %v196 = vpop.permute.xlu0 %195
        %198 = vrot.lane.b32.xlu0 %v135, 65
        %v199 = vpop.permute.xlu0 %198
        %201 = vrot.lane.b32.xlu0 %v135, 62
        %v202 = vpop.permute.xlu0 %201
        %204 = vrot.lane.b32.xlu0 %v135, 59
        %v205 = vpop.permute.xlu0 %204
        %207 = vrot.lane.b32.xlu0 %v135, 56
        %v208 = vpop.permute.xlu0 %207
        %210 = vrot.lane.b32.xlu0 %v135, 53
        %v211 = vpop.permute.xlu0 %210
        %213 = vrot.lane.b32.xlu0 %v135, 50
        %v214 = vpop.permute.xlu0 %213
        %216 = vrot.lane.b32.xlu0 %v135, 47
        %v217 = vpop.permute.xlu0 %216
        %219 = vrot.lane.b32.xlu0 %v135, 44
        %v220 = vpop.permute.xlu0 %219
        %222 = vrot.lane.b32.xlu0 %v135, 41
        %v223 = vpop.permute.xlu0 %222
        %225 = vrot.lane.b32.xlu0 %v135, 38
        %v226 = vpop.permute.xlu0 %225
        %228 = vrot.lane.b32.xlu0 %v135, 35
        %v229 = vpop.permute.xlu0 %228
        %231 = vrot.lane.b32.xlu0 %v135, 32
        %v232 = vpop.permute.xlu0 %231
        %234 = vrot.lane.b32.xlu0 %v135, 29
        %v235 = vpop.permute.xlu0 %234
        %237 = vrot.lane.b32.xlu0 %v135, 26
        %v238 = vpop.permute.xlu0 %237
        %240 = vrot.lane.b32.xlu0 %v135, 23
        %v241 = vpop.permute.xlu0 %240
        %243 = vrot.lane.b32.xlu0 %v135, 20
        %v244 = vpop.permute.xlu0 %243
        %246 = vrot.lane.b32.xlu0 %v135, 17
        %v247 = vpop.permute.xlu0 %246
        %249 = vrot.lane.b32.xlu0 %v135, 14
        %v250 = vpop.permute.xlu0 %249
        %252 = vrot.lane.b32.xlu0 %v135, 11
        %v253 = vpop.permute.xlu0 %252
        %255 = vrot.lane.b32.xlu0 %v135, 8
        %v256 = vpop.permute.xlu0 %255
        %258 = vrot.lane.b32.xlu0 %v135, 5
        %v259 = vpop.permute.xlu0 %258
        %262 = vrot.lane.b32.xlu0 %v135, 2
        %v263 = vpop.permute.xlu0 %262
        %264 = vrot.lane.b32.xlu0 %v136, 2
        %v265 = vpop.permute.xlu0 %264
        %vm266 = vcmask 15360
        %v267 = vsel %vm266, %v263, %v265
        %269 = vrot.lane.b32.xlu0 %v136, 127
        %v270 = vpop.permute.xlu0 %269
        %272 = vrot.lane.b32.xlu0 %v136, 124
        %v273 = vpop.permute.xlu0 %272
        %275 = vrot.lane.b32.xlu0 %v136, 121
        %v276 = vpop.permute.xlu0 %275
        %278 = vrot.lane.b32.xlu0 %v136, 118
        %v279 = vpop.permute.xlu0 %278
        %281 = vrot.lane.b32.xlu0 %v136, 115
        %v282 = vpop.permute.xlu0 %281
        %v284 = vrot.slane %v142, 4
        %vm285 = vcmask 1047556
        %v286 = vsel %vm285, %v284, %v135
        %v287 = vrot.slane %v135, 4
        %v288 = vsel %vm285, %v142, %v287
        %v290 = vunpack.c.l.s4 1983009808
        %v291 = vunpack.c.0.s8 %v290
        %v292 = vperm.slane %v286, %v291
        %v294 = vunpack.c.l.s4 1983009808
        %v295 = vunpack.c.0.s8 %v294
        %v296 = vperm.slane %v288, %v295
        %v297 = vrot.slane %v145, 4
        %v298 = vsel %vm285, %v297, %v139
        %v299 = vrot.slane %v139, 4
        %v300 = vsel %vm285, %v145, %v299
        %v302 = vunpack.c.l.s4 1983009808
        %v303 = vunpack.c.0.s8 %v302
        %v304 = vperm.slane %v298, %v303
        %v306 = vunpack.c.l.s4 1983009808
        %v307 = vunpack.c.0.s8 %v306
        %v308 = vperm.slane %v300, %v307
        %v309 = vrot.slane %v154, 4
        %v310 = vsel %vm285, %v309, %v148
        %v311 = vrot.slane %v148, 4
        %v312 = vsel %vm285, %v154, %v311
        %v314 = vunpack.c.l.s4 1983009808
        %v315 = vunpack.c.0.s8 %v314
        %v316 = vperm.slane %v310, %v315
        %v318 = vunpack.c.l.s4 1983009808
        %v319 = vunpack.c.0.s8 %v318
        %v320 = vperm.slane %v312, %v319
        %v321 = vrot.slane %v157, 4
        %v322 = vsel %vm285, %v321, %v151
        %v323 = vrot.slane %v151, 4
        %v324 = vsel %vm285, %v157, %v323
        %v326 = vunpack.c.l.s4 1983009808
        %v327 = vunpack.c.0.s8 %v326
        %v328 = vperm.slane %v322, %v327
        %v330 = vunpack.c.l.s4 1983009808
        %v331 = vunpack.c.0.s8 %v330
        %v332 = vperm.slane %v324, %v331
        %v333 = vrot.slane %v304, 4
        %v334 = vsel %vm285, %v333, %v292
        %v335 = vrot.slane %v292, 4
        %v336 = vsel %vm285, %v304, %v335
        %v338 = vunpack.c.l.s4 1934713408
        %v339 = vunpack.c.0.s8 %v338
        %v340 = vperm.slane %v334, %v339
        %v342 = vunpack.c.l.s4 1934713408
        %v343 = vunpack.c.0.s8 %v342
        %v344 = vperm.slane %v336, %v343
        %v345 = vrot.slane %v308, 4
        %v346 = vsel %vm285, %v345, %v296
        %v347 = vrot.slane %v296, 4
        %v348 = vsel %vm285, %v308, %v347
        %v350 = vunpack.c.l.s4 1934713408
        %v351 = vunpack.c.0.s8 %v350
        %v352 = vperm.slane %v346, %v351
        %v354 = vunpack.c.l.s4 1934713408
        %v355 = vunpack.c.0.s8 %v354
        %v356 = vperm.slane %v348, %v355
        %v357 = vrot.slane %v328, 4
        %v358 = vsel %vm285, %v357, %v316
        %v359 = vrot.slane %v316, 4
        %v360 = vsel %vm285, %v328, %v359
        %v362 = vunpack.c.l.s4 1934713408
        %v363 = vunpack.c.0.s8 %v362
        %v364 = vperm.slane %v358, %v363
        %v366 = vunpack.c.l.s4 1934713408
        %v367 = vunpack.c.0.s8 %v366
        %v368 = vperm.slane %v360, %v367
        %v369 = vrot.slane %v332, 4
        %v370 = vsel %vm285, %v369, %v320
        %v371 = vrot.slane %v320, 4
        %v372 = vsel %vm285, %v332, %v371
        %v374 = vunpack.c.l.s4 1934713408
        %v375 = vunpack.c.0.s8 %v374
        %v376 = vperm.slane %v370, %v375
        %v378 = vunpack.c.l.s4 1934713408
        %v379 = vunpack.c.0.s8 %v378
        %v380 = vperm.slane %v372, %v379
        %v381 = vrot.slane %v364, 4
        %v382 = vsel %vm285, %v381, %v340
        %v383 = vrot.slane %v340, 4
        %v384 = vsel %vm285, %v364, %v383
        %v385 = vrot.slane %v368, 4
        %v386 = vsel %vm285, %v385, %v344
        %v387 = vrot.slane %v344, 4
        %v388 = vsel %vm285, %v368, %v387
        %v389 = vrot.slane %v376, 4
        %v390 = vsel %vm285, %v389, %v352
        %v391 = vrot.slane %v352, 4
        %v392 = vsel %vm285, %v376, %v391
        %v393 = vrot.slane %v380, 4
        %v394 = vsel %vm285, %v393, %v356
        %v395 = vrot.slane %v356, 4
        %v396 = vsel %vm285, %v380, %v395
        %v397 = vrot.slane %v166, 4
        %v398 = vsel %vm285, %v397, %v160
        %v399 = vrot.slane %v160, 4
        %v400 = vsel %vm285, %v166, %v399
        %v402 = vunpack.c.l.s4 1983009808
        %v403 = vunpack.c.0.s8 %v402
        %v404 = vperm.slane %v398, %v403
        %v406 = vunpack.c.l.s4 1983009808
        %v407 = vunpack.c.0.s8 %v406
        %v408 = vperm.slane %v400, %v407
        %v409 = vrot.slane %v169, 4
        %v410 = vsel %vm285, %v409, %v163
        %v411 = vrot.slane %v163, 4
        %v412 = vsel %vm285, %v169, %v411
        %v414 = vunpack.c.l.s4 1983009808
        %v415 = vunpack.c.0.s8 %v414
        %v416 = vperm.slane %v410, %v415
        %v418 = vunpack.c.l.s4 1983009808
        %v419 = vunpack.c.0.s8 %v418
        %v420 = vperm.slane %v412, %v419
        %v421 = vrot.slane %v178, 4
        %v422 = vsel %vm285, %v421, %v172
        %v423 = vrot.slane %v172, 4
        %v424 = vsel %vm285, %v178, %v423
        %v426 = vunpack.c.l.s4 1983009808
        %v427 = vunpack.c.0.s8 %v426
        %v428 = vperm.slane %v422, %v427
        %v430 = vunpack.c.l.s4 1983009808
        %v431 = vunpack.c.0.s8 %v430
        %v432 = vperm.slane %v424, %v431
        %v433 = vrot.slane %v181, 4
        %v434 = vsel %vm285, %v433, %v175
        %v435 = vrot.slane %v175, 4
        %v436 = vsel %vm285, %v181, %v435
        %v438 = vunpack.c.l.s4 1983009808
        %v439 = vunpack.c.0.s8 %v438
        %v440 = vperm.slane %v434, %v439
        %v442 = vunpack.c.l.s4 1983009808
        %v443 = vunpack.c.0.s8 %v442
        %v444 = vperm.slane %v436, %v443
        %v445 = vrot.slane %v416, 4
        %v446 = vsel %vm285, %v445, %v404
        %v447 = vrot.slane %v404, 4
        %v448 = vsel %vm285, %v416, %v447
        %v450 = vunpack.c.l.s4 1934713408
        %v451 = vunpack.c.0.s8 %v450
        %v452 = vperm.slane %v446, %v451
        %v454 = vunpack.c.l.s4 1934713408
        %v455 = vunpack.c.0.s8 %v454
        %v456 = vperm.slane %v448, %v455
        %v457 = vrot.slane %v420, 4
        %v458 = vsel %vm285, %v457, %v408
        %v459 = vrot.slane %v408, 4
        %v460 = vsel %vm285, %v420, %v459
        %v462 = vunpack.c.l.s4 1934713408
        %v463 = vunpack.c.0.s8 %v462
        %v464 = vperm.slane %v458, %v463
        %v466 = vunpack.c.l.s4 1934713408
        %v467 = vunpack.c.0.s8 %v466
        %v468 = vperm.slane %v460, %v467
        %v469 = vrot.slane %v440, 4
        %v470 = vsel %vm285, %v469, %v428
        %v471 = vrot.slane %v428, 4
        %v472 = vsel %vm285, %v440, %v471
        %v474 = vunpack.c.l.s4 1934713408
        %v475 = vunpack.c.0.s8 %v474
        %v476 = vperm.slane %v470, %v475
        %v478 = vunpack.c.l.s4 1934713408
        %v479 = vunpack.c.0.s8 %v478
        %v480 = vperm.slane %v472, %v479
        %v481 = vrot.slane %v444, 4
        %v482 = vsel %vm285, %v481, %v432
        %v483 = vrot.slane %v432, 4
        %v484 = vsel %vm285, %v444, %v483
        %v486 = vunpack.c.l.s4 1934713408
        %v487 = vunpack.c.0.s8 %v486
        %v488 = vperm.slane %v482, %v487
        %v490 = vunpack.c.l.s4 1934713408
        %v491 = vunpack.c.0.s8 %v490
        %v492 = vperm.slane %v484, %v491
        %v493 = vrot.slane %v476, 4
        %v494 = vsel %vm285, %v493, %v452
        %v495 = vrot.slane %v452, 4
        %v496 = vsel %vm285, %v476, %v495
        %v497 = vrot.slane %v480, 4
        %v498 = vsel %vm285, %v497, %v456
        %v499 = vrot.slane %v456, 4
        %v500 = vsel %vm285, %v480, %v499
        %v501 = vrot.slane %v488, 4
        %v502 = vsel %vm285, %v501, %v464
        %v503 = vrot.slane %v464, 4
        %v504 = vsel %vm285, %v488, %v503
        %v505 = vrot.slane %v492, 4
        %v506 = vsel %vm285, %v505, %v468
        %v507 = vrot.slane %v468, 4
        %v508 = vsel %vm285, %v492, %v507
        %v509 = vrot.slane %v190, 4
        %v510 = vsel %vm285, %v509, %v184
        %v511 = vrot.slane %v184, 4
        %v512 = vsel %vm285, %v190, %v511
        %v514 = vunpack.c.l.s4 1983009808
        %v515 = vunpack.c.0.s8 %v514
        %v516 = vperm.slane %v510, %v515
        %v518 = vunpack.c.l.s4 1983009808
        %v519 = vunpack.c.0.s8 %v518
        %v520 = vperm.slane %v512, %v519
        %v521 = vrot.slane %v193, 4
        %v522 = vsel %vm285, %v521, %v187
        %v523 = vrot.slane %v187, 4
        %v524 = vsel %vm285, %v193, %v523
        %v526 = vunpack.c.l.s4 1983009808
        %v527 = vunpack.c.0.s8 %v526
        %v528 = vperm.slane %v522, %v527
        %v530 = vunpack.c.l.s4 1983009808
        %v531 = vunpack.c.0.s8 %v530
        %v532 = vperm.slane %v524, %v531
        %v533 = vrot.slane %v202, 4
        %v534 = vsel %vm285, %v533, %v196
        %v535 = vrot.slane %v196, 4
        %v536 = vsel %vm285, %v202, %v535
        %v538 = vunpack.c.l.s4 1983009808
        %v539 = vunpack.c.0.s8 %v538
        %v540 = vperm.slane %v534, %v539
        %v542 = vunpack.c.l.s4 1983009808
        %v543 = vunpack.c.0.s8 %v542
        %v544 = vperm.slane %v536, %v543
        %v545 = vrot.slane %v205, 4
        %v546 = vsel %vm285, %v545, %v199
        %v547 = vrot.slane %v199, 4
        %v548 = vsel %vm285, %v205, %v547
        %v550 = vunpack.c.l.s4 1983009808
        %v551 = vunpack.c.0.s8 %v550
        %v552 = vperm.slane %v546, %v551
        %v554 = vunpack.c.l.s4 1983009808
        %v555 = vunpack.c.0.s8 %v554
        %v556 = vperm.slane %v548, %v555
        %v557 = vrot.slane %v528, 4
        %v558 = vsel %vm285, %v557, %v516
        %v559 = vrot.slane %v516, 4
        %v560 = vsel %vm285, %v528, %v559
        %v562 = vunpack.c.l.s4 1934713408
        %v563 = vunpack.c.0.s8 %v562
        %v564 = vperm.slane %v558, %v563
        %v566 = vunpack.c.l.s4 1934713408
        %v567 = vunpack.c.0.s8 %v566
        %v568 = vperm.slane %v560, %v567
        %v569 = vrot.slane %v532, 4
        %v570 = vsel %vm285, %v569, %v520
        %v571 = vrot.slane %v520, 4
        %v572 = vsel %vm285, %v532, %v571
        %v574 = vunpack.c.l.s4 1934713408
        %v575 = vunpack.c.0.s8 %v574
        %v576 = vperm.slane %v570, %v575
        %v578 = vunpack.c.l.s4 1934713408
        %v579 = vunpack.c.0.s8 %v578
        %v580 = vperm.slane %v572, %v579
        %v581 = vrot.slane %v552, 4
        %v582 = vsel %vm285, %v581, %v540
        %v583 = vrot.slane %v540, 4
        %v584 = vsel %vm285, %v552, %v583
        %v586 = vunpack.c.l.s4 1934713408
        %v587 = vunpack.c.0.s8 %v586
        %v588 = vperm.slane %v582, %v587
        %v590 = vunpack.c.l.s4 1934713408
        %v591 = vunpack.c.0.s8 %v590
        %v592 = vperm.slane %v584, %v591
        %v593 = vrot.slane %v556, 4
        %v594 = vsel %vm285, %v593, %v544
        %v595 = vrot.slane %v544, 4
        %v596 = vsel %vm285, %v556, %v595
        %v598 = vunpack.c.l.s4 1934713408
        %v599 = vunpack.c.0.s8 %v598
        %v600 = vperm.slane %v594, %v599
        %v602 = vunpack.c.l.s4 1934713408
        %v603 = vunpack.c.0.s8 %v602
        %v604 = vperm.slane %v596, %v603
        %v605 = vrot.slane %v588, 4
        %v606 = vsel %vm285, %v605, %v564
        %v607 = vrot.slane %v564, 4
        %v608 = vsel %vm285, %v588, %v607
        %v609 = vrot.slane %v592, 4
        %v610 = vsel %vm285, %v609, %v568
        %v611 = vrot.slane %v568, 4
        %v612 = vsel %vm285, %v592, %v611
        %v613 = vrot.slane %v600, 4
        %v614 = vsel %vm285, %v613, %v576
        %v615 = vrot.slane %v576, 4
        %v616 = vsel %vm285, %v600, %v615
        %v617 = vrot.slane %v604, 4
        %v618 = vsel %vm285, %v617, %v580
        %v619 = vrot.slane %v580, 4
        %v620 = vsel %vm285, %v604, %v619
        %v621 = vrot.slane %v214, 4
        %v622 = vsel %vm285, %v621, %v208
        %v623 = vrot.slane %v208, 4
        %v624 = vsel %vm285, %v214, %v623
        %v626 = vunpack.c.l.s4 1983009808
        %v627 = vunpack.c.0.s8 %v626
        %v628 = vperm.slane %v622, %v627
        %v630 = vunpack.c.l.s4 1983009808
        %v631 = vunpack.c.0.s8 %v630
        %v632 = vperm.slane %v624, %v631
        %v633 = vrot.slane %v217, 4
        %v634 = vsel %vm285, %v633, %v211
        %v635 = vrot.slane %v211, 4
        %v636 = vsel %vm285, %v217, %v635
        %v638 = vunpack.c.l.s4 1983009808
        %v639 = vunpack.c.0.s8 %v638
        %v640 = vperm.slane %v634, %v639
        %v642 = vunpack.c.l.s4 1983009808
        %v643 = vunpack.c.0.s8 %v642
        %v644 = vperm.slane %v636, %v643
        %v645 = vrot.slane %v226, 4
        %v646 = vsel %vm285, %v645, %v220
        %v647 = vrot.slane %v220, 4
        %v648 = vsel %vm285, %v226, %v647
        %v650 = vunpack.c.l.s4 1983009808
        %v651 = vunpack.c.0.s8 %v650
        %v652 = vperm.slane %v646, %v651
        %v654 = vunpack.c.l.s4 1983009808
        %v655 = vunpack.c.0.s8 %v654
        %v656 = vperm.slane %v648, %v655
        %v657 = vrot.slane %v229, 4
        %v658 = vsel %vm285, %v657, %v223
        %v659 = vrot.slane %v223, 4
        %v660 = vsel %vm285, %v229, %v659
        %v662 = vunpack.c.l.s4 1983009808
        %v663 = vunpack.c.0.s8 %v662
        %v664 = vperm.slane %v658, %v663
        %v666 = vunpack.c.l.s4 1983009808
        %v667 = vunpack.c.0.s8 %v666
        %v668 = vperm.slane %v660, %v667
        %v669 = vrot.slane %v640, 4
        %v670 = vsel %vm285, %v669, %v628
        %v671 = vrot.slane %v628, 4
        %v672 = vsel %vm285, %v640, %v671
        %v674 = vunpack.c.l.s4 1934713408
        %v675 = vunpack.c.0.s8 %v674
        %v676 = vperm.slane %v670, %v675
        %v678 = vunpack.c.l.s4 1934713408
        %v679 = vunpack.c.0.s8 %v678
        %v680 = vperm.slane %v672, %v679
        %v681 = vrot.slane %v644, 4
        %v682 = vsel %vm285, %v681, %v632
        %v683 = vrot.slane %v632, 4
        %v684 = vsel %vm285, %v644, %v683
        %v686 = vunpack.c.l.s4 1934713408
        %v687 = vunpack.c.0.s8 %v686
        %v688 = vperm.slane %v682, %v687
        %v690 = vunpack.c.l.s4 1934713408
        %v691 = vunpack.c.0.s8 %v690
        %v692 = vperm.slane %v684, %v691
        %v693 = vrot.slane %v664, 4
        %v694 = vsel %vm285, %v693, %v652
        %v695 = vrot.slane %v652, 4
        %v696 = vsel %vm285, %v664, %v695
        %v698 = vunpack.c.l.s4 1934713408
        %v699 = vunpack.c.0.s8 %v698
        %v700 = vperm.slane %v694, %v699
        %v702 = vunpack.c.l.s4 1934713408
        %v703 = vunpack.c.0.s8 %v702
        %v704 = vperm.slane %v696, %v703
        %v705 = vrot.slane %v668, 4
        %v706 = vsel %vm285, %v705, %v656
        %v707 = vrot.slane %v656, 4
        %v708 = vsel %vm285, %v668, %v707
        %v710 = vunpack.c.l.s4 1934713408
        %v711 = vunpack.c.0.s8 %v710
        %v712 = vperm.slane %v706, %v711
        %v714 = vunpack.c.l.s4 1934713408
        %v715 = vunpack.c.0.s8 %v714
        %v716 = vperm.slane %v708, %v715
        %v717 = vrot.slane %v700, 4
        %v718 = vsel %vm285, %v717, %v676
        %v719 = vrot.slane %v676, 4
        %v720 = vsel %vm285, %v700, %v719
        %v721 = vrot.slane %v704, 4
        %v722 = vsel %vm285, %v721, %v680
        %v723 = vrot.slane %v680, 4
        %v724 = vsel %vm285, %v704, %v723
        %v725 = vrot.slane %v712, 4
        %v726 = vsel %vm285, %v725, %v688
        %v727 = vrot.slane %v688, 4
        %v728 = vsel %vm285, %v712, %v727
        %v729 = vrot.slane %v716, 4
        %v730 = vsel %vm285, %v729, %v692
        %v731 = vrot.slane %v692, 4
        %v732 = vsel %vm285, %v716, %v731
        %v733 = vrot.slane %v238, 4
        %v734 = vsel %vm285, %v733, %v232
        %v735 = vrot.slane %v232, 4
        %v736 = vsel %vm285, %v238, %v735
        %v738 = vunpack.c.l.s4 1983009808
        %v739 = vunpack.c.0.s8 %v738
        %v740 = vperm.slane %v734, %v739
        %v742 = vunpack.c.l.s4 1983009808
        %v743 = vunpack.c.0.s8 %v742
        %v744 = vperm.slane %v736, %v743
        %v745 = vrot.slane %v241, 4
        %v746 = vsel %vm285, %v745, %v235
        %v747 = vrot.slane %v235, 4
        %v748 = vsel %vm285, %v241, %v747
        %v750 = vunpack.c.l.s4 1983009808
        %v751 = vunpack.c.0.s8 %v750
        %v752 = vperm.slane %v746, %v751
        %v754 = vunpack.c.l.s4 1983009808
        %v755 = vunpack.c.0.s8 %v754
        %v756 = vperm.slane %v748, %v755
        %v757 = vrot.slane %v250, 4
        %v758 = vsel %vm285, %v757, %v244
        %v759 = vrot.slane %v244, 4
        %v760 = vsel %vm285, %v250, %v759
        %v762 = vunpack.c.l.s4 1983009808
        %v763 = vunpack.c.0.s8 %v762
        %v764 = vperm.slane %v758, %v763
        %v766 = vunpack.c.l.s4 1983009808
        %v767 = vunpack.c.0.s8 %v766
        %v768 = vperm.slane %v760, %v767
        %v769 = vrot.slane %v253, 4
        %v770 = vsel %vm285, %v769, %v247
        %v771 = vrot.slane %v247, 4
        %v772 = vsel %vm285, %v253, %v771
        %v774 = vunpack.c.l.s4 1983009808
        %v775 = vunpack.c.0.s8 %v774
        %v776 = vperm.slane %v770, %v775
        %v778 = vunpack.c.l.s4 1983009808
        %v779 = vunpack.c.0.s8 %v778
        %v780 = vperm.slane %v772, %v779
        %v781 = vrot.slane %v752, 4
        %v782 = vsel %vm285, %v781, %v740
        %v783 = vrot.slane %v740, 4
        %v784 = vsel %vm285, %v752, %v783
        %v786 = vunpack.c.l.s4 1934713408
        %v787 = vunpack.c.0.s8 %v786
        %v788 = vperm.slane %v782, %v787
        %v790 = vunpack.c.l.s4 1934713408
        %v791 = vunpack.c.0.s8 %v790
        %v792 = vperm.slane %v784, %v791
        %v793 = vrot.slane %v756, 4
        %v794 = vsel %vm285, %v793, %v744
        %v795 = vrot.slane %v744, 4
        %v796 = vsel %vm285, %v756, %v795
        %v798 = vunpack.c.l.s4 1934713408
        %v799 = vunpack.c.0.s8 %v798
        %v800 = vperm.slane %v794, %v799
        %v802 = vunpack.c.l.s4 1934713408
        %v803 = vunpack.c.0.s8 %v802
        %v804 = vperm.slane %v796, %v803
        %v805 = vrot.slane %v776, 4
        %v806 = vsel %vm285, %v805, %v764
        %v807 = vrot.slane %v764, 4
        %v808 = vsel %vm285, %v776, %v807
        %v810 = vunpack.c.l.s4 1934713408
        %v811 = vunpack.c.0.s8 %v810
        %v812 = vperm.slane %v806, %v811
        %v814 = vunpack.c.l.s4 1934713408
        %v815 = vunpack.c.0.s8 %v814
        %v816 = vperm.slane %v808, %v815
        %v817 = vrot.slane %v780, 4
        %v818 = vsel %vm285, %v817, %v768
        %v819 = vrot.slane %v768, 4
        %v820 = vsel %vm285, %v780, %v819
        %v822 = vunpack.c.l.s4 1934713408
        %v823 = vunpack.c.0.s8 %v822
        %v824 = vperm.slane %v818, %v823
        %v826 = vunpack.c.l.s4 1934713408
        %v827 = vunpack.c.0.s8 %v826
        %v828 = vperm.slane %v820, %v827
        %v829 = vrot.slane %v812, 4
        %v830 = vsel %vm285, %v829, %v788
        %v831 = vrot.slane %v788, 4
        %v832 = vsel %vm285, %v812, %v831
        %v833 = vrot.slane %v816, 4
        %v834 = vsel %vm285, %v833, %v792
        %v835 = vrot.slane %v792, 4
        %v836 = vsel %vm285, %v816, %v835
        %v837 = vrot.slane %v824, 4
        %v838 = vsel %vm285, %v837, %v800
        %v839 = vrot.slane %v800, 4
        %v840 = vsel %vm285, %v824, %v839
        %v841 = vrot.slane %v828, 4
        %v842 = vsel %vm285, %v841, %v804
        %v843 = vrot.slane %v804, 4
        %v844 = vsel %vm285, %v828, %v843
        %v845 = vrot.slane %v267, 4
        %v846 = vsel %vm285, %v845, %v256
        %v847 = vrot.slane %v256, 4
        %v848 = vsel %vm285, %v267, %v847
        %v850 = vunpack.c.l.s4 1983009808
        %v851 = vunpack.c.0.s8 %v850
        %v852 = vperm.slane %v846, %v851
        %v854 = vunpack.c.l.s4 1983009808
        %v855 = vunpack.c.0.s8 %v854
        %v856 = vperm.slane %v848, %v855
        %v857 = vrot.slane %v270, 4
        %v858 = vsel %vm285, %v857, %v259
        %v859 = vrot.slane %v259, 4
        %v860 = vsel %vm285, %v270, %v859
        %v862 = vunpack.c.l.s4 1983009808
        %v863 = vunpack.c.0.s8 %v862
        %v864 = vperm.slane %v858, %v863
        %v866 = vunpack.c.l.s4 1983009808
        %v867 = vunpack.c.0.s8 %v866
        %v868 = vperm.slane %v860, %v867
        %v869 = vrot.slane %v279, 4
        %v870 = vsel %vm285, %v869, %v273
        %v871 = vrot.slane %v273, 4
        %v872 = vsel %vm285, %v279, %v871
        %v874 = vunpack.c.l.s4 1983009808
        %v875 = vunpack.c.0.s8 %v874
        %v876 = vperm.slane %v870, %v875
        %v878 = vunpack.c.l.s4 1983009808
        %v879 = vunpack.c.0.s8 %v878
        %v880 = vperm.slane %v872, %v879
        %v881 = vrot.slane %v282, 4
        %v882 = vsel %vm285, %v881, %v276
        %v883 = vrot.slane %v276, 4
        %v884 = vsel %vm285, %v282, %v883
        %v886 = vunpack.c.l.s4 1983009808
        %v887 = vunpack.c.0.s8 %v886
        %v888 = vperm.slane %v882, %v887
        %v890 = vunpack.c.l.s4 1983009808
        %v891 = vunpack.c.0.s8 %v890
        %v892 = vperm.slane %v884, %v891
        %v893 = vrot.slane %v864, 4
        %v894 = vsel %vm285, %v893, %v852
        %v895 = vrot.slane %v852, 4
        %v896 = vsel %vm285, %v864, %v895
        %v898 = vunpack.c.l.s4 1934713408
        %v899 = vunpack.c.0.s8 %v898
        %v900 = vperm.slane %v894, %v899
        %v902 = vunpack.c.l.s4 1934713408
        %v903 = vunpack.c.0.s8 %v902
        %v904 = vperm.slane %v896, %v903
        %v905 = vrot.slane %v868, 4
        %v906 = vsel %vm285, %v905, %v856
        %v907 = vrot.slane %v856, 4
        %v908 = vsel %vm285, %v868, %v907
        %v910 = vunpack.c.l.s4 1934713408
        %v911 = vunpack.c.0.s8 %v910
        %v912 = vperm.slane %v906, %v911
        %v914 = vunpack.c.l.s4 1934713408
        %v915 = vunpack.c.0.s8 %v914
        %v916 = vperm.slane %v908, %v915
        %v917 = vrot.slane %v888, 4
        %v918 = vsel %vm285, %v917, %v876
        %v919 = vrot.slane %v876, 4
        %v920 = vsel %vm285, %v888, %v919
        %v922 = vunpack.c.l.s4 1934713408
        %v923 = vunpack.c.0.s8 %v922
        %v924 = vperm.slane %v918, %v923
        %v926 = vunpack.c.l.s4 1934713408
        %v927 = vunpack.c.0.s8 %v926
        %v928 = vperm.slane %v920, %v927
        %v929 = vrot.slane %v892, 4
        %v930 = vsel %vm285, %v929, %v880
        %v931 = vrot.slane %v880, 4
        %v932 = vsel %vm285, %v892, %v931
        %v934 = vunpack.c.l.s4 1934713408
        %v935 = vunpack.c.0.s8 %v934
        %v936 = vperm.slane %v930, %v935
        %v938 = vunpack.c.l.s4 1934713408
        %v939 = vunpack.c.0.s8 %v938
        %v940 = vperm.slane %v932, %v939
        %v941 = vrot.slane %v924, 4
        %v942 = vsel %vm285, %v941, %v900
        %v943 = vrot.slane %v900, 4
        %v944 = vsel %vm285, %v924, %v943
        %v945 = vrot.slane %v928, 4
        %v946 = vsel %vm285, %v945, %v904
        %v947 = vrot.slane %v904, 4
        %v948 = vsel %vm285, %v928, %v947
        %v949 = vrot.slane %v936, 4
        %v950 = vsel %vm285, %v949, %v912
        %v951 = vrot.slane %v912, 4
        %v952 = vsel %vm285, %v936, %v951
        %v953 = vrot.slane %v940, 4
        %v954 = vsel %vm285, %v953, %v916
        %v955 = vrot.slane %v916, 4
        %v956 = vsel %vm285, %v940, %v955
        %957 = vxpose.xlu0.b32.start [1/16] %v382, 128
        %958 = vxpose.xlu0.b32.cont [2/16] %v494, 128
        %959 = vxpose.xlu0.b32.cont [3/16] %v606, 128
        %960 = vxpose.xlu0.b32.cont [4/16] %v718, 128
        %961 = vxpose.xlu0.b32.cont [5/16] %v830, 128
        %962 = vxpose.xlu0.b32.cont [6/16] %v942, 128
        %963 = vxpose.xlu0.b32.cont [7/16] 0.0, 128
        %964 = vxpose.xlu0.b32.cont [8/16] 0.0, 128
        %965 = vxpose.xlu0.b32.cont [9/16] 0.0, 128
        %966 = vxpose.xlu0.b32.cont [10/16] 0.0, 128
        %967 = vxpose.xlu0.b32.cont [11/16] 0.0, 128
        %968 = vxpose.xlu0.b32.cont [12/16] 0.0, 128
        %969 = vxpose.xlu0.b32.cont [13/16] 0.0, 128
        %970 = vxpose.xlu0.b32.cont [14/16] 0.0, 128
        %971 = vxpose.xlu0.b32.cont [15/16] 0.0, 128
        %972 = vxpose.xlu0.b32.end [16/16] 0.0, 128
        %v973 = vpop.trf.xlu0
        %v974 = vpop.trf.xlu0
        %v975 = vpop.trf.xlu0
        %v976 = vpop.trf.xlu0
        %v977 = vpop.trf.xlu0
        %v978 = vpop.trf.xlu0
        %v979 = vpop.trf.xlu0
        %v980 = vpop.trf.xlu0
        %v981 = vpop.trf.xlu0
        %v982 = vpop.trf.xlu0
        %v983 = vpop.trf.xlu0
        %v984 = vpop.trf.xlu0
        %v985 = vpop.trf.xlu0
        %v986 = vpop.trf.xlu0
        %v987 = vpop.trf.xlu0
        %v988 = vpop.trf.xlu0
        %989 = vxpose.xlu0.b32.start [1/16] %v384, 128
        %990 = vxpose.xlu0.b32.cont [2/16] %v496, 128
        %991 = vxpose.xlu0.b32.cont [3/16] %v608, 128
        %992 = vxpose.xlu0.b32.cont [4/16] %v720, 128
        %993 = vxpose.xlu0.b32.cont [5/16] %v832, 128
        %994 = vxpose.xlu0.b32.cont [6/16] %v944, 128
        %995 = vxpose.xlu0.b32.cont [7/16] 0.0, 128
        %996 = vxpose.xlu0.b32.cont [8/16] 0.0, 128
        %997 = vxpose.xlu0.b32.cont [9/16] 0.0, 128
        %998 = vxpose.xlu0.b32.cont [10/16] 0.0, 128
        %999 = vxpose.xlu0.b32.cont [11/16] 0.0, 128
        %1000 = vxpose.xlu0.b32.cont [12/16] 0.0, 128
        %1001 = vxpose.xlu0.b32.cont [13/16] 0.0, 128
        %1002 = vxpose.xlu0.b32.cont [14/16] 0.0, 128
        %1003 = vxpose.xlu0.b32.cont [15/16] 0.0, 128
        %1004 = vxpose.xlu0.b32.end [16/16] 0.0, 128
        %v1005 = vpop.trf.xlu0
        %v1006 = vpop.trf.xlu0
        %v1007 = vpop.trf.xlu0
        %v1008 = vpop.trf.xlu0
        %v1009 = vpop.trf.xlu0
        %v1010 = vpop.trf.xlu0
        %v1011 = vpop.trf.xlu0
        %v1012 = vpop.trf.xlu0
        %v1013 = vpop.trf.xlu0
        %v1014 = vpop.trf.xlu0
        %v1015 = vpop.trf.xlu0
        %v1016 = vpop.trf.xlu0
        %v1017 = vpop.trf.xlu0
        %v1018 = vpop.trf.xlu0
        %v1019 = vpop.trf.xlu0
        %v1020 = vpop.trf.xlu0
        %1021 = vxpose.xlu0.b32.start [1/16] %v386, 128
        %1022 = vxpose.xlu0.b32.cont [2/16] %v498, 128
        %1023 = vxpose.xlu0.b32.cont [3/16] %v610, 128
        %1024 = vxpose.xlu0.b32.cont [4/16] %v722, 128
        %1025 = vxpose.xlu0.b32.cont [5/16] %v834, 128
        %1026 = vxpose.xlu0.b32.cont [6/16] %v946, 128
        %1027 = vxpose.xlu0.b32.cont [7/16] 0.0, 128
        %1028 = vxpose.xlu0.b32.cont [8/16] 0.0, 128
        %1029 = vxpose.xlu0.b32.cont [9/16] 0.0, 128
        %1030 = vxpose.xlu0.b32.cont [10/16] 0.0, 128
        %1031 = vxpose.xlu0.b32.cont [11/16] 0.0, 128
        %1032 = vxpose.xlu0.b32.cont [12/16] 0.0, 128
        %1033 = vxpose.xlu0.b32.cont [13/16] 0.0, 128
        %1034 = vxpose.xlu0.b32.cont [14/16] 0.0, 128
        %1035 = vxpose.xlu0.b32.cont [15/16] 0.0, 128
        %1036 = vxpose.xlu0.b32.end [16/16] 0.0, 128
        %v1037 = vpop.trf.xlu0
        %v1038 = vpop.trf.xlu0
        %v1039 = vpop.trf.xlu0
        %v1040 = vpop.trf.xlu0
        %v1041 = vpop.trf.xlu0
        %v1042 = vpop.trf.xlu0
        %v1043 = vpop.trf.xlu0
        %v1044 = vpop.trf.xlu0
        %v1045 = vpop.trf.xlu0
        %v1046 = vpop.trf.xlu0
        %v1047 = vpop.trf.xlu0
        %v1048 = vpop.trf.xlu0
        %v1049 = vpop.trf.xlu0
        %v1050 = vpop.trf.xlu0
        %v1051 = vpop.trf.xlu0
        %v1052 = vpop.trf.xlu0
        %1053 = vxpose.xlu0.b32.start [1/16] %v388, 128
        %1054 = vxpose.xlu0.b32.cont [2/16] %v500, 128
        %1055 = vxpose.xlu0.b32.cont [3/16] %v612, 128
        %1056 = vxpose.xlu0.b32.cont [4/16] %v724, 128
        %1057 = vxpose.xlu0.b32.cont [5/16] %v836, 128
        %1058 = vxpose.xlu0.b32.cont [6/16] %v948, 128
        %1059 = vxpose.xlu0.b32.cont [7/16] 0.0, 128
        %1060 = vxpose.xlu0.b32.cont [8/16] 0.0, 128
        %1061 = vxpose.xlu0.b32.cont [9/16] 0.0, 128
        %1062 = vxpose.xlu0.b32.cont [10/16] 0.0, 128
        %1063 = vxpose.xlu0.b32.cont [11/16] 0.0, 128
        %1064 = vxpose.xlu0.b32.cont [12/16] 0.0, 128
        %1065 = vxpose.xlu0.b32.cont [13/16] 0.0, 128
        %1066 = vxpose.xlu0.b32.cont [14/16] 0.0, 128
        %1067 = vxpose.xlu0.b32.cont [15/16] 0.0, 128
        %1068 = vxpose.xlu0.b32.end [16/16] 0.0, 128
        %v1069 = vpop.trf.xlu0
        %v1070 = vpop.trf.xlu0
        %v1071 = vpop.trf.xlu0
        %v1072 = vpop.trf.xlu0
        %v1073 = vpop.trf.xlu0
        %v1074 = vpop.trf.xlu0
        %v1075 = vpop.trf.xlu0
        %v1076 = vpop.trf.xlu0
        %v1077 = vpop.trf.xlu0
        %v1078 = vpop.trf.xlu0
        %v1079 = vpop.trf.xlu0
        %v1080 = vpop.trf.xlu0
        %v1081 = vpop.trf.xlu0
        %v1082 = vpop.trf.xlu0
        %v1083 = vpop.trf.xlu0
        %v1084 = vpop.trf.xlu0
        %1085 = vxpose.xlu0.b32.start [1/16] %v390, 128
        %1086 = vxpose.xlu0.b32.cont [2/16] %v502, 128
        %1087 = vxpose.xlu0.b32.cont [3/16] %v614, 128
        %1088 = vxpose.xlu0.b32.cont [4/16] %v726, 128
        %1089 = vxpose.xlu0.b32.cont [5/16] %v838, 128
        %1090 = vxpose.xlu0.b32.cont [6/16] %v950, 128
        %1091 = vxpose.xlu0.b32.cont [7/16] 0.0, 128
        %1092 = vxpose.xlu0.b32.cont [8/16] 0.0, 128
        %1093 = vxpose.xlu0.b32.cont [9/16] 0.0, 128
        %1094 = vxpose.xlu0.b32.cont [10/16] 0.0, 128
        %1095 = vxpose.xlu0.b32.cont [11/16] 0.0, 128
        %1096 = vxpose.xlu0.b32.cont [12/16] 0.0, 128
        %1097 = vxpose.xlu0.b32.cont [13/16] 0.0, 128
        %1098 = vxpose.xlu0.b32.cont [14/16] 0.0, 128
        %1099 = vxpose.xlu0.b32.cont [15/16] 0.0, 128
        %1100 = vxpose.xlu0.b32.end [16/16] 0.0, 128
        %v1101 = vpop.trf.xlu0
        %v1102 = vpop.trf.xlu0
        %v1103 = vpop.trf.xlu0
        %v1104 = vpop.trf.xlu0
        %v1105 = vpop.trf.xlu0
        %v1106 = vpop.trf.xlu0
        %v1107 = vpop.trf.xlu0
        %v1108 = vpop.trf.xlu0
        %v1109 = vpop.trf.xlu0
        %v1110 = vpop.trf.xlu0
        %v1111 = vpop.trf.xlu0
        %v1112 = vpop.trf.xlu0
        %v1113 = vpop.trf.xlu0
        %v1114 = vpop.trf.xlu0
        %v1115 = vpop.trf.xlu0
        %v1116 = vpop.trf.xlu0
        %1117 = vxpose.xlu0.b32.start [1/16] %v392, 128
        %1118 = vxpose.xlu0.b32.cont [2/16] %v504, 128
        %1119 = vxpose.xlu0.b32.cont [3/16] %v616, 128
        %1120 = vxpose.xlu0.b32.cont [4/16] %v728, 128
        %1121 = vxpose.xlu0.b32.cont [5/16] %v840, 128
        %1122 = vxpose.xlu0.b32.cont [6/16] %v952, 128
        %1123 = vxpose.xlu0.b32.cont [7/16] 0.0, 128
        %1124 = vxpose.xlu0.b32.cont [8/16] 0.0, 128
        %1125 = vxpose.xlu0.b32.cont [9/16] 0.0, 128
        %1126 = vxpose.xlu0.b32.cont [10/16] 0.0, 128
        %1127 = vxpose.xlu0.b32.cont [11/16] 0.0, 128
        %1128 = vxpose.xlu0.b32.cont [12/16] 0.0, 128
        %1129 = vxpose.xlu0.b32.cont [13/16] 0.0, 128
        %1130 = vxpose.xlu0.b32.cont [14/16] 0.0, 128
        %1131 = vxpose.xlu0.b32.cont [15/16] 0.0, 128
        %1132 = vxpose.xlu0.b32.end [16/16] 0.0, 128
        %v1133 = vpop.trf.xlu0
        %v1134 = vpop.trf.xlu0
        %v1135 = vpop.trf.xlu0
        %v1136 = vpop.trf.xlu0
        %v1137 = vpop.trf.xlu0
        %v1138 = vpop.trf.xlu0
        %v1139 = vpop.trf.xlu0
        %v1140 = vpop.trf.xlu0
        %v1141 = vpop.trf.xlu0
        %v1142 = vpop.trf.xlu0
        %v1143 = vpop.trf.xlu0
        %v1144 = vpop.trf.xlu0
        %v1145 = vpop.trf.xlu0
        %v1146 = vpop.trf.xlu0
        %v1147 = vpop.trf.xlu0
        %v1148 = vpop.trf.xlu0
        %1149 = vxpose.xlu0.b32.start [1/16] %v394, 128
        %1150 = vxpose.xlu0.b32.cont [2/16] %v506, 128
        %1151 = vxpose.xlu0.b32.cont [3/16] %v618, 128
        %1152 = vxpose.xlu0.b32.cont [4/16] %v730, 128
        %1153 = vxpose.xlu0.b32.cont [5/16] %v842, 128
        %1154 = vxpose.xlu0.b32.cont [6/16] %v954, 128
        %1155 = vxpose.xlu0.b32.cont [7/16] 0.0, 128
        %1156 = vxpose.xlu0.b32.cont [8/16] 0.0, 128
        %1157 = vxpose.xlu0.b32.cont [9/16] 0.0, 128
        %1158 = vxpose.xlu0.b32.cont [10/16] 0.0, 128
        %1159 = vxpose.xlu0.b32.cont [11/16] 0.0, 128
        %1160 = vxpose.xlu0.b32.cont [12/16] 0.0, 128
        %1161 = vxpose.xlu0.b32.cont [13/16] 0.0, 128
        %1162 = vxpose.xlu0.b32.cont [14/16] 0.0, 128
        %1163 = vxpose.xlu0.b32.cont [15/16] 0.0, 128
        %1164 = vxpose.xlu0.b32.end [16/16] 0.0, 128
        %v1165 = vpop.trf.xlu0
        %v1166 = vpop.trf.xlu0
        %v1167 = vpop.trf.xlu0
        %v1168 = vpop.trf.xlu0
        %v1169 = vpop.trf.xlu0
        %v1170 = vpop.trf.xlu0
        %v1171 = vpop.trf.xlu0
        %v1172 = vpop.trf.xlu0
        %v1173 = vpop.trf.xlu0
        %v1174 = vpop.trf.xlu0
        %v1175 = vpop.trf.xlu0
        %v1176 = vpop.trf.xlu0
        %v1177 = vpop.trf.xlu0
        %v1178 = vpop.trf.xlu0
        %v1179 = vpop.trf.xlu0
        %v1180 = vpop.trf.xlu0
        %1181 = vxpose.xlu0.b32.start [1/16] %v396, 128
        %1182 = vxpose.xlu0.b32.cont [2/16] %v508, 128
        %1183 = vxpose.xlu0.b32.cont [3/16] %v620, 128
        %1184 = vxpose.xlu0.b32.cont [4/16] %v732, 128
        %1185 = vxpose.xlu0.b32.cont [5/16] %v844, 128
        %1186 = vxpose.xlu0.b32.cont [6/16] %v956, 128
        %1187 = vxpose.xlu0.b32.cont [7/16] 0.0, 128
        %1188 = vxpose.xlu0.b32.cont [8/16] 0.0, 128
        %1189 = vxpose.xlu0.b32.cont [9/16] 0.0, 128
        %1190 = vxpose.xlu0.b32.cont [10/16] 0.0, 128
        %1191 = vxpose.xlu0.b32.cont [11/16] 0.0, 128
        %1192 = vxpose.xlu0.b32.cont [12/16] 0.0, 128
        %1193 = vxpose.xlu0.b32.cont [13/16] 0.0, 128
        %1194 = vxpose.xlu0.b32.cont [14/16] 0.0, 128
        %1195 = vxpose.xlu0.b32.cont [15/16] 0.0, 128
        %1196 = vxpose.xlu0.b32.end [16/16] 0.0, 128
        %v1197 = vpop.trf.xlu0
        %v1198 = vpop.trf.xlu0
        %v1199 = vpop.trf.xlu0
        %v1200 = vpop.trf.xlu0
        %v1201 = vpop.trf.xlu0
        %v1202 = vpop.trf.xlu0
        %v1203 = vpop.trf.xlu0
        %v1204 = vpop.trf.xlu0
        %v1205 = vpop.trf.xlu0
        %v1206 = vpop.trf.xlu0
        %v1207 = vpop.trf.xlu0
        %v1208 = vpop.trf.xlu0
        %v1209 = vpop.trf.xlu0
        %v1210 = vpop.trf.xlu0
        %v1211 = vpop.trf.xlu0
        %v1212 = vpop.trf.xlu0
        %v1213 = vrot.slane %v1037, 4
        %v1214 = vsel %vm285, %v1213, %v973
        %v1216 = vunpack.c.l.s4 1983009808
        %v1217 = vunpack.c.0.s8 %v1216
        %v1218 = vperm.slane %v1214, %v1217
        %v1219 = vrot.slane %v1069, 4
        %v1220 = vsel %vm285, %v1219, %v1005
        %v1222 = vunpack.c.l.s4 1983009808
        %v1223 = vunpack.c.0.s8 %v1222
        %v1224 = vperm.slane %v1220, %v1223
        %v1225 = vrot.slane %v1165, 4
        %v1226 = vsel %vm285, %v1225, %v1101
        %v1228 = vunpack.c.l.s4 1983009808
        %v1229 = vunpack.c.0.s8 %v1228
        %v1230 = vperm.slane %v1226, %v1229
        %v1231 = vrot.slane %v1197, 4
        %v1232 = vsel %vm285, %v1231, %v1133
        %v1234 = vunpack.c.l.s4 1983009808
        %v1235 = vunpack.c.0.s8 %v1234
        %v1236 = vperm.slane %v1232, %v1235
        %v1237 = vrot.slane %v1224, 4
        %v1238 = vsel %vm285, %v1237, %v1218
        %v1239 = vrot.slane %v1218, 4
        %v1240 = vsel %vm285, %v1224, %v1239
        %v1242 = vunpack.c.l.s4 1934713408
        %v1243 = vunpack.c.0.s8 %v1242
        %v1244 = vperm.slane %v1238, %v1243
        %v1246 = vunpack.c.l.s4 1934713408
        %v1247 = vunpack.c.0.s8 %v1246
        %v1248 = vperm.slane %v1240, %v1247
        %v1249 = vrot.slane %v1236, 4
        %v1250 = vsel %vm285, %v1249, %v1230
        %v1251 = vrot.slane %v1230, 4
        %v1252 = vsel %vm285, %v1236, %v1251
        %v1254 = vunpack.c.l.s4 1934713408
        %v1255 = vunpack.c.0.s8 %v1254
        %v1256 = vperm.slane %v1250, %v1255
        %v1258 = vunpack.c.l.s4 1934713408
        %v1259 = vunpack.c.0.s8 %v1258
        %v1260 = vperm.slane %v1252, %v1259
        %v1261 = vrot.slane %v1256, 4
        %v1262 = vsel %vm285, %v1261, %v1244
        %v1263 = vrot.slane %v1244, 4
        %v1264 = vsel %vm285, %v1256, %v1263
        %v1265 = vrot.slane %v1260, 4
        %v1266 = vsel %vm285, %v1265, %v1248
        %1268 = vrot.lane.b32.xlu0 %v1264, 48
        %v1269 = vpop.permute.xlu0 %1268
        %1272 = vrot.lane.b32.xlu0 %v1266, 96
        %v1273 = vpop.permute.xlu0 %1272
        %vm1275 = vcmask 392192
        %v1276 = vsel %vm1275, %v1262, %v1269
        %vm1277 = vcmask 785408
        %v1278 = vsel %vm1277, %v1276, %v1273
        %1279 = vst [vmem:[%s134] sm:$0xff] %v1278
        %vm1280 = vcmask 130048
        %1281 = vst.msk [vmem:[%s134 + $0x8] sm:$0xff] %vm1280, %v1273
        %s1282 = sand.u32 %s52, 1
        %s1283 = scalar_lea.sflag [#allocation4], %s1282
        %s1284 = sand.u32 %s52, 1
        %s1285 = smul.addr %s1284, 16
        %s1286 = scalar_lea.vmem [#allocation5], %s1285
        // Predicated region
        $region29: #{tpu_custom_call.1} parent=23 // pred_check
          %p1287 = pneg %p62
        $region30: #{tpu_custom_call.1} parent=23 // pred_check_branch
          %1289 = sbr.rel (%p1287) target = $region32
        $region31: #{tpu_custom_call.1} parent=23 // pred_region
          %1291 = vsyncadd %s1283, 0
          %s1292 = smul.addr %s18, 2
          %s1293 = smul.addr %s1292, 8
          %s1294 = scalar_lea.hbm %s1, %s1293
          %s1296 = sshll.u32 %s1286, 4
          %s1297 = int_to_ptr.vmem [resolvable:$true] %s1296
          %s1298 = sshll.u32 %s1294, 4
          %s1299 = int_to_ptr.hbm [resolvable:$true] %s1298
          %1301 = dma.vmem_to_hbm [thread:$0]  %s1297, 256, %s1299, %s1283
        $region32: #{tpu_custom_call.1} parent=23 // pred_fallthru
          _
      $region24: #{tpu_custom_call.1} parent=5 // pred_fallthru
        _
      %p1302 = scmp.le.s32.totalorder 2, %s13
      // Predicated region
      $region33: #{tpu_custom_call.1} parent=5 // pred_check
        %p1303 = pneg %p1302
      $region34: #{tpu_custom_call.1} parent=5 // pred_check_branch
        %1305 = sbr.rel (%p1303) target = $region36
      $region35: #{tpu_custom_call.1} parent=5 // pred_region
        %s1306 = ssub.s32 %s13, 2
        // Predicated region
        $region37: #{tpu_custom_call.1} parent=35 // pred_check
          %p1307 = pneg %p68
        $region38: #{tpu_custom_call.1} parent=35 // pred_check_branch
          %1309 = sbr.rel (%p1307) target = $region40
        $region39: #{tpu_custom_call.1} parent=35 // pred_region
          %s1310 = sand.u32 %s53, 1
          %s1311 = scalar_lea.sflag [#allocation4], %s1310
          %s1312 = sand.u32 %s53, 1
          %s1313 = smul.addr %s1312, 16
          %s1314 = scalar_lea.vmem [#allocation5], %s1313
          %1316 = dma.done %s1311, 256
        $region40: #{tpu_custom_call.1} parent=35 // pred_fallthru
          _
      $region36: #{tpu_custom_call.1} parent=5 // pred_fallthru
        _
    $region6: #{tpu_custom_call.1} parent=1 // loop_footer
      %s17 = sadd.s32 1, %s13
    $region7: #{tpu_custom_call.1} parent=1 // loop_footer_branch
      %12 = sbr.rel target = $region3
    $region8: #{tpu_custom_call.1} parent=1 // loop_exit
      _
    %1317 = vsyncpa [#allocation3], 1
    %s1318 = scalar_lea.sflag [#allocation3], 1
    %1319 = vsyncpa %s1318, 1
    %1320 = vsyncpa [#allocation4], 1
    %s1321 = scalar_lea.sflag [#allocation4], 1
    %1322 = vsyncpa %s1321, 1

// kernel: tpu_custom_call.1
$region0: #{tpu_custom_call.1}
  #allocation0 [shape = 'u32[]', space=smem, size = 0x4, offset = 0x4, fixed_abs, tag = 'smem constant byte address 0x4 - core index']
  #allocation1 [shape = 'u32[72,128]{1,0:T(1,128)}', space=vmem, size = 0x9000, scoped, tag = 'internal scratch']
  %s0 = inlined_call_operand.hbm [shape: f32[2,144], index: 0, kind: input, shape index: {}]
  %s1 = inlined_call_operand.hbm [shape: f32[2,144], index: 1, kind: output, shape index: {}]
  %s2 = sld [smem:[#allocation0]]
  $region18: #{tpu_custom_call.1} parent=0
    _
  %s4 = ssub.s32 1, %s2
  %s5 = scalar_select 0, %s4, %s2
  $region1: #{tpu_custom_call.1} parent=0
    #allocation2 [shape = 'u8[2048]{0}', space=vmem, size = 0x800, scoped, tag = 'input window, operand 0, single buffered']
    #allocation3 [shape = 's32[1]{0}', space=sflag, size = 0x4, scoped, tag = 'scoped memory for tpu_custom_call.1']
    #allocation4 [shape = 's32[1]{0}', space=sflag, size = 0x4, scoped, tag = 'scoped memory for tpu_custom_call.1']
    #allocation5 [shape = 'u8[2048]{0}', space=vmem, size = 0x800, scoped, tag = 'output window, operand 0, single buffered']
    %6 = vsyncpa [#allocation3], 0
    %7 = vsyncpa [#allocation4], 0
    // Predicated region
    $region2: #{tpu_custom_call.1} parent=1 // pred_check
      _
    $region3: #{tpu_custom_call.1} parent=1 // pred_check_branch
      %9 = sbr.rel (0) target = $region5
    $region4: #{tpu_custom_call.1} parent=1 // pred_region
      %11 = vsyncadd [#allocation3], 0
      %s13 = sshll.u32 %s0, 4
      %s14 = int_to_ptr.hbm [resolvable:$true] %s13
      %s15 = sshll.u32 [#allocation2], 4
      %s16 = int_to_ptr.vmem [resolvable:$true] %s15
      %18 = dma.hbm_to_vmem [thread:$0]  %s14, 64, %s16, [#allocation3]
    $region5: #{tpu_custom_call.1} parent=1 // pred_fallthru
      _
    // Predicated region
    $region6: #{tpu_custom_call.1} parent=1 // pred_check
      _
    $region7: #{tpu_custom_call.1} parent=1 // pred_check_branch
      %20 = sbr.rel (0) target = $region9
    $region8: #{tpu_custom_call.1} parent=1 // pred_region
      %22 = dma.done [#allocation3], 64
    $region9: #{tpu_custom_call.1} parent=1 // pred_fallthru
      _
    %v23 = vld [vmem:[#allocation2] sm:$0xf]
    %25 = vst [vmem:[#allocation1] ss:$4 sm:$0xff] %v23
    %v26 = vld.sshfl [vmem:[#allocation1] sm:$0xff pattern:$0x73625140]
    %27 = vrot.lane.b32.xlu0 %v26, 96
    %v28 = vpop.permute.xlu0 %27
    %30 = vst [vmem:[#allocation1] ss:$4 sm:$0xff] %v23
    %v31 = vld.sshfl [vmem:[#allocation1] sm:$0xff pattern:$0x73625140]
    %32 = vrot.lane.b32.xlu0 %v31, 64
    %v33 = vpop.permute.xlu0 %32
    %35 = vst [vmem:[#allocation1] ss:$4 sm:$0xff] %v23
    %v36 = vld.sshfl [vmem:[#allocation1] sm:$0xff pattern:$0x73625140]
    %37 = vrot.lane.b32.xlu0 %v36, 32
    %v38 = vpop.permute.xlu0 %37
    %40 = vst [vmem:[#allocation1] ss:$4 sm:$0xff] %v23
    %v41 = vld.sshfl [vmem:[#allocation1] sm:$0xff pattern:$0x73625140]
    %42 = vrot.lane.b32.xlu0 %v41, 96
    %v43 = vpop.permute.xlu0 %42
    %45 = vst [vmem:[#allocation1] ss:$4 sm:$0xff] %v23
    %v46 = vld.sshfl [vmem:[#allocation1] sm:$0xff pattern:$0x73625140]
    %47 = vrot.lane.b32.xlu0 %v46, 64
    %v48 = vpop.permute.xlu0 %47
    %50 = vst [vmem:[#allocation1] ss:$4 sm:$0xff] %v23
    %v51 = vld.sshfl [vmem:[#allocation1] sm:$0xff pattern:$0x73625140]
    %52 = vrot.lane.b32.xlu0 %v51, 32
    %v53 = vpop.permute.xlu0 %52
    %55 = vst [vmem:[#allocation1] ss:$4 sm:$0xff] %v23
    %v56 = vld.sshfl [vmem:[#allocation1 + $0x8] sm:$0xff pattern:$0x73625140]
    %vm57 = vcmask 130048
    %v58 = vsel %vm57, %v23, %v28
    %vm59 = vcmask 261120
    %v60 = vsel %vm59, %v58, %v33
    %vm61 = vcmask 392192
    %v62 = vsel %vm61, %v60, %v38
    %vm63 = vcmask 523264
    %v64 = vsel %vm63, %v62, %v23
    %vm65 = vcmask 654336
    %v66 = vsel %vm65, %v64, %v43
    %vm67 = vcmask 785408
    %v68 = vsel %vm67, %v66, %v48
    %vm69 = vcmask 916480
    %v70 = vsel %vm69, %v68, %v53
    %v72 = vrot.slane %v56, 6
    %vm73 = vcmask 1041408
    %v74 = vsel %vm73, %v70, %v72
    %vm76 = vcmask 125954
    %vm77 = vmor %vm76, %vm73
    %78 = vst.msk [vmem:[#allocation5] sm:$0xf] %vm77, %v74
    // Predicated region
    $region10: #{tpu_custom_call.1} parent=1 // pred_check
      _
    $region11: #{tpu_custom_call.1} parent=1 // pred_check_branch
      %80 = sbr.rel (0) target = $region13
    $region12: #{tpu_custom_call.1} parent=1 // pred_region
      %82 = vsyncadd [#allocation4], 0
      %s84 = sshll.u32 [#allocation5], 4
      %s85 = int_to_ptr.vmem [resolvable:$true] %s84
      %s86 = sshll.u32 %s1, 4
      %s87 = int_to_ptr.hbm [resolvable:$true] %s86
      %89 = dma.vmem_to_hbm [thread:$0]  %s85, 64, %s87, [#allocation4]
    $region13: #{tpu_custom_call.1} parent=1 // pred_fallthru
      _
    // Predicated region
    $region14: #{tpu_custom_call.1} parent=1 // pred_check
      _
    $region15: #{tpu_custom_call.1} parent=1 // pred_check_branch
      %91 = sbr.rel (0) target = $region17
    $region16: #{tpu_custom_call.1} parent=1 // pred_region
      %93 = dma.done [#allocation4], 64
    $region17: #{tpu_custom_call.1} parent=1 // pred_fallthru
      _
    %94 = vsyncpa [#allocation3], 1
    %95 = vsyncpa [#allocation4], 1

</llo_original>
